<compile_context>
chip_gen: v7x
topology: tpu7x:2x2x1
jax: 0.10.0
libtpu: 0.0.40
codegen_flags: <defaults>
</compile_context>

<pallas_src>
import functools

import jax
import jax.numpy as jnp
from jax.experimental import pallas as pl
from jax.experimental.pallas import tpu as pltpu

LANES = 128
MAX_TILE_R = 4096               # (4096,128) f32 block = 2 MiB; 2 inputs x 2 buffers = 8 MiB
NUM_CHUNKS = 2                  # leading "parallel" axis -> both v7x TensorCores
VMEM_LIMIT_BYTES = 48 * 1024 * 1024   # headroom for temporaries; < v7x 64 MiB physical


def _round_up(x: int, m: int) -> int:
    return (x + m - 1) // m * m


def _sublane_align(*dtypes) -> int:
    # Minimum sublane tile: 8 rows for 4-byte, 16 for 2-byte, 32 for 1-byte dtypes.
    return max(max(8, 32 // jnp.dtype(d).itemsize) for d in dtypes)


def _soft_f1_partial_kernel(yp_ref, yt_ref, tp_ref, fn_ref, fp_ref, *,
                            tile_r: int, steps_per_chunk: int,
                            rows_total: int, full_blocks: int,
                            any_masked: bool):
    c = pl.program_id(0)            # chunk (parallel across TensorCores)
    s = pl.program_id(1)            # streaming step within the chunk (arbitrary)

    # Output blocks double as per-chunk accumulators (index depends only on c,
    # so they stay resident in VMEM across the whole "arbitrary" axis).
    @pl.when(s == 0)
    def _init():
        tp_ref[...] = jnp.zeros_like(tp_ref)
        fn_ref[...] = jnp.zeros_like(fn_ref)
        fp_ref[...] = jnp.zeros_like(fp_ref)

    yp = yp_ref[...].astype(jnp.float32)
    yt = yt_ref[...].astype(jnp.float32)

    groups = tile_r // 8

    def accumulate(ypv, ytv):
        # In-tile sublane tree reduce: (tile_r,128) -> (groups,8,128) -> (8,128).
        def fold(x):
            return jnp.sum(x.reshape(groups, 8, LANES), axis=0)
        tp_ref[...] += fold(ytv * ypv)              # Σ yt * yp
        fn_ref[...] += fold((1.0 - ytv) * ypv)      # Σ (1 - yt) * yp
        fp_ref[...] += fold(ytv * (1.0 - ypv))      # Σ yt * (1 - yp)

    if any_masked:
        gb = c * steps_per_chunk + s                # global block index
        is_edge = gb >= full_blocks                 # partial or fully-dead block

        @pl.when(is_edge)
        def _masked():
            row = gb * tile_r + jax.lax.broadcasted_iota(
                jnp.int32, (tile_r, LANES), 0)
            valid = row < rows_total
            accumulate(jnp.where(valid, yp, 0.0), jnp.where(valid, yt, 0.0))

        @pl.when(gb < full_blocks)
        def _full():
            accumulate(yp, yt)
    else:
        accumulate(yp, yt)


def _partial_sums_pallas(yp2: jax.Array, yt2: jax.Array, max_tile_rows: int):
    """Returns (Σ yt*yp, Σ (1-yt)*yp, Σ yt*(1-yp)) over an (R, 128) slab."""
    R = yp2.shape[0]
    align = _sublane_align(yp2.dtype, yt2.dtype)
    tile_r = max(align, min(max_tile_rows, _round_up(R, align)))
    tile_r = _round_up(tile_r, align)

    n_blocks = pl.cdiv(R, tile_r)
    full_blocks = R // tile_r                       # blocks fully inside the array
    chunks = NUM_CHUNKS if n_blocks >= NUM_CHUNKS else 1
    steps = pl.cdiv(n_blocks, chunks)
    any_masked = chunks * steps > full_blocks       # partial and/or dead blocks exist

    kernel = functools.partial(
        _soft_f1_partial_kernel, tile_r=tile_r, steps_per_chunk=steps,
        rows_total=R, full_blocks=full_blocks, any_masked=any_masked)

    def in_map(c, s):
        # Clamp so trailing "dead" steps (chunks*steps > n_blocks) re-read the
        # last real block; their contribution is masked to zero in the kernel.
        return (jnp.minimum(c * steps + s, n_blocks - 1), 0)

    out_map = lambda c, s: (c, 0)
    part = jax.ShapeDtypeStruct((chunks * 8, LANES), jnp.float32)
    in_bytes = (yp2.size * yp2.dtype.itemsize + yt2.size * yt2.dtype.itemsize)

    tp_p, fn_p, fp_p = pl.pallas_call(
        kernel,
        out_shape=(part, part, part),
        grid_spec=pltpu.PrefetchScalarGridSpec(
            num_scalar_prefetch=0,
            grid=(chunks, steps),
            in_specs=[pl.BlockSpec((tile_r, LANES), in_map),
                      pl.BlockSpec((tile_r, LANES), in_map)],
            out_specs=(pl.BlockSpec((8, LANES), out_map),
                       pl.BlockSpec((8, LANES), out_map),
                       pl.BlockSpec((8, LANES), out_map)),
        ),
        compiler_params=pltpu.CompilerParams(
            dimension_semantics=("parallel", "arbitrary"),
            vmem_limit_bytes=VMEM_LIMIT_BYTES),
        cost_estimate=pl.CostEstimate(
            flops=8 * yp2.size, transcendentals=0,
            bytes_accessed=in_bytes + 3 * chunks * 8 * LANES * 4),
    )(yp2, yt2)

    return jnp.sum(tp_p), jnp.sum(fn_p), jnp.sum(fp_p)


def soft_f1_loss(y_pred: jax.Array, y_true: jax.Array,
                 beta: float = 1.0, eps: float = 1e-6,
                 max_tile_rows: int = MAX_TILE_R) -> jax.Array:
    """Pallas TPU implementation of SoftF1Loss.forward (returns scalar f32)."""
    assert y_pred.shape == y_true.shape
    n = y_pred.size
    yp_flat = y_pred.reshape(-1)                    # row-major flatten (free)
    yt_flat = y_true.reshape(-1)

    n_main = (n // LANES) * LANES
    tp = jnp.float32(0.0)
    fn = jnp.float32(0.0)
    fp = jnp.float32(0.0)

    if n_main < n:
        # <128-element lane tail: tiny pure-jnp partial sums (no full-array pad).
        ypt = yp_flat[n_main:].astype(jnp.float32)
        ytt = yt_flat[n_main:].astype(jnp.float32)
        tp = tp + jnp.sum(ytt * ypt)
        fn = fn + jnp.sum((1.0 - ytt) * ypt)
        fp = fp + jnp.sum(ytt * (1.0 - ypt))

    if n_main > 0:
        yp_main = yp_flat if n_main == n else yp_flat[:n_main]
        yt_main = yt_flat if n_main == n else yt_flat[:n_main]
        R = n_main // LANES
        tp_k, fn_k, fp_k = _partial_sums_pallas(
            yp_main.reshape(R, LANES), yt_main.reshape(R, LANES), max_tile_rows)
        tp = tp + tp_k
        fn = fn + fn_k
        fp = fp + fp_k

    beta2 = float(beta) ** 2
    epsf = jnp.float32(eps)
    p = tp / (tp + fp + epsf)
    r = tp / (tp + fn + epsf)
    f1 = (1.0 + beta2) * (p * r) / (beta2 * p + r + epsf)
    f1 = jnp.where(jnp.isnan(f1), jnp.zeros_like(f1), f1)
    return (1.0 - f1).astype(jnp.float32)           # f1 is scalar -> .mean() is identity


def _reference_soft_f1(y_pred, y_true, beta=1.0, eps=1e-6):
    yp = y_pred.astype(jnp.float32).reshape(-1)
    yt = y_true.astype(jnp.float32).reshape(-1)
    tp = jnp.sum(yt * yp)
    fn = jnp.sum((1.0 - yt) * yp)
    fp = jnp.sum(yt * (1.0 - yp))
    p = tp / (tp + fp + eps)
    r = tp / (tp + fn + eps)
    f1 = (1.0 + beta ** 2) * (p * r) / (beta ** 2 * p + r + eps)
    f1 = jnp.where(jnp.isnan(f1), 0.0, f1)
    return 1.0 - f1


if __name__ == "__main__":
    key = jax.random.PRNGKey(0)

    def make_inputs(k, shape):
        k1, k2 = jax.random.split(k)
        y_pred = jax.nn.sigmoid(jax.random.normal(k1, shape, dtype=jnp.float32))
        y_true = jax.random.bernoulli(k2, p=0.5, shape=shape).astype(jnp.float32)
        return y_pred, y_true

    # (shape, max_tile_rows) — small shapes that exercise every kernel path:
    #   1) primary NCHW case: single full block, single chunk, no mask
    #   2) ragged size: lane tail + partial (masked) row block
    #   3) small tile override: 2 chunks, full + partial + dead blocks, lane tail
    #   4) 2 chunks with only full blocks (unmasked multi-chunk path)
    cases = [
        ((2, 4, 16, 16), MAX_TILE_R),
        ((3, 5, 37, 41), MAX_TILE_R),
        ((3, 5, 37, 41), 64),
        ((2, 4, 16, 16), 8),
    ]

    keys = jax.random.split(key, len(cases))
    for k, (shape, tile_rows) in zip(keys, cases):
        y_pred, y_true = make_inputs(k, shape)
        loss = soft_f1_loss(y_pred, y_true, beta=1.0, eps=1e-6,
                            max_tile_rows=tile_rows)
        loss = jax.block_until_ready(loss)
        ref = jax.block_until_ready(_reference_soft_f1(y_pred, y_true))
        assert jnp.allclose(loss, ref, atol=1e-4, rtol=1e-4), (shape, tile_rows, loss, ref)

    print("KERNEL_OK")
</pallas_src>

<mosaic_0001>
module attributes {stable_mosaic.version = 11 : i64} {
  func.func @_soft_f1_partial_kernel(%arg0: i32, %arg1: i32, %arg2: memref<16x128xf32, #tpu.memory_space<vmem>>, %arg3: memref<16x128xf32, #tpu.memory_space<vmem>>, %arg4: memref<8x128xf32, #tpu.memory_space<vmem>>, %arg5: memref<8x128xf32, #tpu.memory_space<vmem>>, %arg6: memref<8x128xf32, #tpu.memory_space<vmem>>) attributes {dimension_semantics = [#tpu.dimension_semantics<parallel>, #tpu.dimension_semantics<arbitrary>], iteration_bounds = array<i64: 1, 1>, scalar_prefetch = 0 : i64, scratch_operands = 0 : i64, tpu.core_type = #tpu.core_type<tc>, window_params = [{transform_indices = @transform_0, window_bounds = array<i64: 16, 128>}, {transform_indices = @transform_1, window_bounds = array<i64: 16, 128>}, {transform_indices = @transform_2, window_bounds = array<i64: 8, 128>}, {transform_indices = @transform_3, window_bounds = array<i64: 8, 128>}, {transform_indices = @transform_4, window_bounds = array<i64: 8, 128>}]} {
    %c0_i32 = arith.constant 0 : i32
    %0 = arith.cmpi eq, %arg1, %c0_i32 : i32
    %1 = arith.extui %0 : i1 to i32
    %c0_i32_0 = arith.constant 0 : i32
    %2 = arith.cmpi ne, %1, %c0_i32_0 : i32
    scf.if %2 {
      %cst_20 = arith.constant 0.000000e+00 : f32
      %27 = vector.broadcast %cst_20 : f32 to vector<8x128xf32>
      %c0_21 = arith.constant 0 : index
      %c0_22 = arith.constant 0 : index
      %28 = vector.load %arg4[%c0_21, %c0_22] : memref<8x128xf32, #tpu.memory_space<vmem>>, vector<8x128xf32>
      tpu.vector_store %arg4[%c0_21, %c0_22], %27 {strides = array<i32>} : memref<8x128xf32, #tpu.memory_space<vmem>>, vector<8x128xf32>,
      %cst_23 = arith.constant 0.000000e+00 : f32
      %29 = vector.broadcast %cst_23 : f32 to vector<8x128xf32>
      %c0_24 = arith.constant 0 : index
      %c0_25 = arith.constant 0 : index
      %30 = vector.load %arg5[%c0_24, %c0_25] : memref<8x128xf32, #tpu.memory_space<vmem>>, vector<8x128xf32>
      tpu.vector_store %arg5[%c0_24, %c0_25], %29 {strides = array<i32>} : memref<8x128xf32, #tpu.memory_space<vmem>>, vector<8x128xf32>,
      %cst_26 = arith.constant 0.000000e+00 : f32
      %31 = vector.broadcast %cst_26 : f32 to vector<8x128xf32>
      %c0_27 = arith.constant 0 : index
      %c0_28 = arith.constant 0 : index
      %32 = vector.load %arg6[%c0_27, %c0_28] : memref<8x128xf32, #tpu.memory_space<vmem>>, vector<8x128xf32>
      tpu.vector_store %arg6[%c0_27, %c0_28], %31 {strides = array<i32>} : memref<8x128xf32, #tpu.memory_space<vmem>>, vector<8x128xf32>,
    } else {
    }
    %c0 = arith.constant 0 : index
    %c0_1 = arith.constant 0 : index
    %3 = vector.load %arg2[%c0, %c0_1] : memref<16x128xf32, #tpu.memory_space<vmem>>, vector<16x128xf32>
    %c0_2 = arith.constant 0 : index
    %c0_3 = arith.constant 0 : index
    %4 = vector.load %arg3[%c0_2, %c0_3] : memref<16x128xf32, #tpu.memory_space<vmem>>, vector<16x128xf32>
    %c0_4 = arith.constant 0 : index
    %c0_5 = arith.constant 0 : index
    %5 = vector.load %arg4[%c0_4, %c0_5] : memref<8x128xf32, #tpu.memory_space<vmem>>, vector<8x128xf32>
    %6 = arith.mulf %4, %3 : vector<16x128xf32>
    %7 = vector.shape_cast %6 : vector<16x128xf32> to vector<2x8x128xf32>
    %cst = arith.constant dense<0.000000e+00> : vector<8x128xf32>
    %8 = vector.multi_reduction <add>, %7, %cst [0] : vector<2x8x128xf32> to vector<8x128xf32>
    %9 = arith.addf %5, %8 : vector<8x128xf32>
    %c0_6 = arith.constant 0 : index
    %c0_7 = arith.constant 0 : index
    %10 = vector.load %arg4[%c0_6, %c0_7] : memref<8x128xf32, #tpu.memory_space<vmem>>, vector<8x128xf32>
    tpu.vector_store %arg4[%c0_6, %c0_7], %9 {strides = array<i32>} : memref<8x128xf32, #tpu.memory_space<vmem>>, vector<8x128xf32>,
    %c0_8 = arith.constant 0 : index
    %c0_9 = arith.constant 0 : index
    %11 = vector.load %arg5[%c0_8, %c0_9] : memref<8x128xf32, #tpu.memory_space<vmem>>, vector<8x128xf32>
    %cst_10 = arith.constant 1.000000e+00 : f32
    %12 = vector.broadcast %cst_10 : f32 to vector<16x128xf32>
    %13 = arith.subf %12, %4 : vector<16x128xf32>
    %14 = arith.mulf %13, %3 : vector<16x128xf32>
    %15 = vector.shape_cast %14 : vector<16x128xf32> to vector<2x8x128xf32>
    %cst_11 = arith.constant dense<0.000000e+00> : vector<8x128xf32>
    %16 = vector.multi_reduction <add>, %15, %cst_11 [0] : vector<2x8x128xf32> to vector<8x128xf32>
    %17 = arith.addf %11, %16 : vector<8x128xf32>
    %c0_12 = arith.constant 0 : index
    %c0_13 = arith.constant 0 : index
    %18 = vector.load %arg5[%c0_12, %c0_13] : memref<8x128xf32, #tpu.memory_space<vmem>>, vector<8x128xf32>
    tpu.vector_store %arg5[%c0_12, %c0_13], %17 {strides = array<i32>} : memref<8x128xf32, #tpu.memory_space<vmem>>, vector<8x128xf32>,
    %c0_14 = arith.constant 0 : index
    %c0_15 = arith.constant 0 : index
    %19 = vector.load %arg6[%c0_14, %c0_15] : memref<8x128xf32, #tpu.memory_space<vmem>>, vector<8x128xf32>
    %cst_16 = arith.constant 1.000000e+00 : f32
    %20 = vector.broadcast %cst_16 : f32 to vector<16x128xf32>
    %21 = arith.subf %20, %3 : vector<16x128xf32>
    %22 = arith.mulf %4, %21 : vector<16x128xf32>
    %23 = vector.shape_cast %22 : vector<16x128xf32> to vector<2x8x128xf32>
    %cst_17 = arith.constant dense<0.000000e+00> : vector<8x128xf32>
    %24 = vector.multi_reduction <add>, %23, %cst_17 [0] : vector<2x8x128xf32> to vector<8x128xf32>
    %25 = arith.addf %19, %24 : vector<8x128xf32>
    %c0_18 = arith.constant 0 : index
    %c0_19 = arith.constant 0 : index
    %26 = vector.load %arg6[%c0_18, %c0_19] : memref<8x128xf32, #tpu.memory_space<vmem>>, vector<8x128xf32>
    tpu.vector_store %arg6[%c0_18, %c0_19], %25 {strides = array<i32>} : memref<8x128xf32, #tpu.memory_space<vmem>>, vector<8x128xf32>,
    return
  }
  func.func @transform_0(%arg0: i32, %arg1: i32) -> (i32, i32) {
    %c1_i32 = arith.constant 1 : i32
    %0 = arith.muli %arg0, %c1_i32 : i32
    %1 = arith.addi %0, %arg1 : i32
    %c0_i32 = arith.constant 0 : i32
    %2 = arith.minsi %1, %c0_i32 : i32
    %c0_i32_0 = arith.constant 0 : i32
    %c0_i32_1 = arith.constant 0 : i32
    return %2, %c0_i32_0 : i32, i32
  }
  func.func @transform_1(%arg0: i32, %arg1: i32) -> (i32, i32) {
    %c1_i32 = arith.constant 1 : i32
    %0 = arith.muli %arg0, %c1_i32 : i32
    %1 = arith.addi %0, %arg1 : i32
    %c0_i32 = arith.constant 0 : i32
    %2 = arith.minsi %1, %c0_i32 : i32
    %c0_i32_0 = arith.constant 0 : i32
    %c0_i32_1 = arith.constant 0 : i32
    return %2, %c0_i32_0 : i32, i32
  }
  func.func @transform_2(%arg0: i32, %arg1: i32) -> (i32, i32) {
    %c0_i32 = arith.constant 0 : i32
    %c0_i32_0 = arith.constant 0 : i32
    return %arg0, %c0_i32 : i32, i32
  }
  func.func @transform_3(%arg0: i32, %arg1: i32) -> (i32, i32) {
    %c0_i32 = arith.constant 0 : i32
    %c0_i32_0 = arith.constant 0 : i32
    return %arg0, %c0_i32 : i32, i32
  }
  func.func @transform_4(%arg0: i32, %arg1: i32) -> (i32, i32) {
    %c0_i32 = arith.constant 0 : i32
    %c0_i32_0 = arith.constant 0 : i32
    return %arg0, %c0_i32 : i32, i32
  }
}

</mosaic_0001>

<llo_original>
// kernel: tpu_custom_call.1
$region0: #{tpu_custom_call.1}
  #allocation0 [shape = 'u32[]', space=smem, size = 0x4, offset = 0x4, fixed_abs, tag = 'smem constant byte address 0x4 - core index']
  #allocation1 [shape = 'u32[144,128]{1,0:T(1,128)}', space=vmem, size = 0x12000, scoped, tag = 'internal scratch']
  %s0 = inlined_call_operand.hbm [shape: f32[16,128], index: 0, kind: input, shape index: {}]
  %s1 = inlined_call_operand.hbm [shape: f32[16,128], index: 1, kind: input, shape index: {}]
  %s2 = inlined_call_operand.hbm [shape: f32[8,128], index: 2, kind: output, shape index: {0}]
  %s3 = inlined_call_operand.hbm [shape: f32[8,128], index: 3, kind: output, shape index: {1}]
  %s4 = inlined_call_operand.hbm [shape: f32[8,128], index: 4, kind: output, shape index: {2}]
  %5 = xla_tuple %s2, %s3, %s4
  %s6 = sld [smem:[#allocation0]]
  $region46: #{tpu_custom_call.1} parent=0
    _
  %s8 = ssub.s32 1, %s6
  %s9 = scalar_select 0, %s8, %s6
  $region1: #{tpu_custom_call.1} parent=0
    #allocation2 [shape = 'u8[8192]{0}', space=vmem, size = 0x2000, scoped, tag = 'input window, operand 0, single buffered']
    #allocation3 [shape = 's32[1]{0}', space=sflag, size = 0x4, scoped, tag = 'scoped memory for tpu_custom_call.1']
    #allocation4 [shape = 's32[1]{0}', space=sflag, size = 0x4, scoped, tag = 'scoped memory for tpu_custom_call.1']
    #allocation5 [shape = 'u8[8192]{0}', space=vmem, size = 0x2000, scoped, tag = 'input window, operand 1, single buffered']
    #allocation6 [shape = 's32[1]{0}', space=sflag, size = 0x4, scoped, tag = 'scoped memory for tpu_custom_call.1']
    #allocation7 [shape = 'u8[4096]{0}', space=vmem, size = 0x1000, scoped, tag = 'output window, operand 0, single buffered']
    #allocation8 [shape = 'u8[4096]{0}', space=vmem, size = 0x1000, scoped, tag = 'output window, operand 1, single buffered']
    #allocation9 [shape = 's32[1]{0}', space=sflag, size = 0x4, scoped, tag = 'scoped memory for tpu_custom_call.1']
    #allocation10 [shape = 'u8[4096]{0}', space=vmem, size = 0x1000, scoped, tag = 'output window, operand 2, single buffered']
    %10 = vsyncpa [#allocation3], 0
    %11 = vsyncpa [#allocation6], 0
    %12 = vsyncpa [#allocation4], 0
    %13 = vsyncpa [#allocation9], 0
    // Predicated region
    $region2: #{tpu_custom_call.1} parent=1 // pred_check
      _
    $region3: #{tpu_custom_call.1} parent=1 // pred_check_branch
      %15 = sbr.rel (0) target = $region5
    $region4: #{tpu_custom_call.1} parent=1 // pred_region
      %s16 = sadd.s32 0, 0
      %p17 = scmp.lt.s32.totalorder %s16, 0
      %s18 = scalar_select %p17, %s16, 0
      %s19 = smul.u32 2, %s18
      %s21 = ssub.s32 256, 256
      %22 = vsyncadd [#allocation3], %s21
      %s23 = smul.addr %s19, 128
      %s24 = scalar_lea.hbm %s0, %s23
      %s25 = sshll.u32 [#allocation2], 4
      %s26 = int_to_ptr.vmem [resolvable:$true] %s25
      %31 = dma.hbm_to_vmem [thread:$0]  %s24, 256, %s26, [#allocation3], 128, 128, 8
    $region5: #{tpu_custom_call.1} parent=1 // pred_fallthru
      _
    // Predicated region
    $region6: #{tpu_custom_call.1} parent=1 // pred_check
      _
    $region7: #{tpu_custom_call.1} parent=1 // pred_check_branch
      %33 = sbr.rel (0) target = $region9
    $region8: #{tpu_custom_call.1} parent=1 // pred_region
      %s34 = sadd.s32 0, 0
      %p35 = scmp.lt.s32.totalorder %s34, 0
      %s36 = scalar_select %p35, %s34, 0
      %s37 = smul.u32 2, %s36
      %s39 = ssub.s32 256, 256
      %40 = vsyncadd [#allocation6], %s39
      %s41 = smul.addr %s37, 128
      %s42 = scalar_lea.hbm %s1, %s41
      %s43 = sshll.u32 [#allocation5], 4
      %s44 = int_to_ptr.vmem [resolvable:$true] %s43
      %49 = dma.hbm_to_vmem [thread:$0]  %s42, 256, %s44, [#allocation6], 128, 128, 8
    $region9: #{tpu_custom_call.1} parent=1 // pred_fallthru
      _
    // Predicated region
    $region10: #{tpu_custom_call.1} parent=1 // pred_check
      _
    $region11: #{tpu_custom_call.1} parent=1 // pred_check_branch
      %51 = sbr.rel (0) target = $region13
    $region12: #{tpu_custom_call.1} parent=1 // pred_region
      %52 = dma.done [#allocation3], 256
    $region13: #{tpu_custom_call.1} parent=1 // pred_fallthru
      _
    // Predicated region
    $region14: #{tpu_custom_call.1} parent=1 // pred_check
      _
    $region15: #{tpu_custom_call.1} parent=1 // pred_check_branch
      %54 = sbr.rel (0) target = $region17
    $region16: #{tpu_custom_call.1} parent=1 // pred_region
      %55 = dma.done [#allocation6], 256
    $region17: #{tpu_custom_call.1} parent=1 // pred_fallthru
      _
    %s56 = sadd.s32 0, 0
    %p57 = scmp.lt.s32.totalorder %s56, 0
    %s58 = scalar_select %p57, %s56, 0
    %s59 = smul.u32 2, %s58
    %s60 = sadd.s32 0, 0
    %p61 = scmp.lt.s32.totalorder %s60, 0
    %s62 = scalar_select %p61, %s60, 0
    %s63 = smul.u32 2, %s62
    %p64 = scmp.eq.s32.totalorder 0, 0
    // Predicated region
    $region18: #{tpu_custom_call.1} parent=1 // pred_check
      %p65 = pneg %p64
    $region19: #{tpu_custom_call.1} parent=1 // pred_check_branch
      %67 = sbr.rel (%p65) target = $region21
    $region20: #{tpu_custom_call.1} parent=1 // pred_region
      %68 = vst [vmem:[#allocation7] sm:$0xff] 0.0
      %69 = vst [vmem:[#allocation8] sm:$0xff] 0.0
      %70 = vst [vmem:[#allocation10] sm:$0xff] 0.0
    $region21: #{tpu_custom_call.1} parent=1 // pred_fallthru
      _
    %v71 = vld [vmem:[#allocation2] sm:$0xff]
    %v72 = vld [vmem:[#allocation2 + $0x8] sm:$0xff]
    %v73 = vld [vmem:[#allocation5] sm:$0xff]
    %v74 = vld [vmem:[#allocation5 + $0x8] sm:$0xff]
    %v75 = vld [vmem:[#allocation7] sm:$0xff]
    %v76 = vmul.f32 %v73, %v71
    %v77 = vmul.f32 %v74, %v72
    %v78 = vadd.f32 %v76, %v77
    %v79 = vadd.f32 %v75, %v78
    %80 = vst [vmem:[#allocation7] sm:$0xff] %v79
    %v81 = vld [vmem:[#allocation8] sm:$0xff]
    %v82 = vsub.f32 1.0, %v73
    %v83 = vsub.f32 1.0, %v74
    %v84 = vmul.f32 %v82, %v71
    %v85 = vmul.f32 %v83, %v72
    %v86 = vadd.f32 %v84, %v85
    %v87 = vadd.f32 %v81, %v86
    %88 = vst [vmem:[#allocation8] sm:$0xff] %v87
    %v89 = vld [vmem:[#allocation10] sm:$0xff]
    %v90 = vsub.f32 1.0, %v71
    %v91 = vsub.f32 1.0, %v72
    %v92 = vmul.f32 %v73, %v90
    %v93 = vmul.f32 %v74, %v91
    %v94 = vadd.f32 %v92, %v93
    %v95 = vadd.f32 %v89, %v94
    %96 = vst [vmem:[#allocation10] sm:$0xff] %v95
    // Predicated region
    $region22: #{tpu_custom_call.1} parent=1 // pred_check
      _
    $region23: #{tpu_custom_call.1} parent=1 // pred_check_branch
      %98 = sbr.rel (0) target = $region25
    $region24: #{tpu_custom_call.1} parent=1 // pred_region
      %s100 = ssub.s32 128, 128
      %101 = vsyncadd [#allocation4], %s100
      %s103 = sshll.u32 [#allocation7], 4
      %s104 = int_to_ptr.vmem [resolvable:$true] %s103
      %106 = dma.vmem_to_hbm [thread:$0]  %s104, 128, %s2, [#allocation4]
    $region25: #{tpu_custom_call.1} parent=1 // pred_fallthru
      _
    // Predicated region
    $region26: #{tpu_custom_call.1} parent=1 // pred_check
      _
    $region27: #{tpu_custom_call.1} parent=1 // pred_check_branch
      %108 = sbr.rel (0) target = $region29
    $region28: #{tpu_custom_call.1} parent=1 // pred_region
      %s110 = ssub.s32 128, 128
      %111 = vsyncadd [#allocation9], %s110
      %s113 = sshll.u32 [#allocation8], 4
      %s114 = int_to_ptr.vmem [resolvable:$true] %s113
      %116 = dma.vmem_to_hbm [thread:$0]  %s114, 128, %s3, [#allocation9]
    $region29: #{tpu_custom_call.1} parent=1 // pred_fallthru
      _
    // Predicated region
    $region30: #{tpu_custom_call.1} parent=1 // pred_check
      _
    $region31: #{tpu_custom_call.1} parent=1 // pred_check_branch
      %118 = sbr.rel (0) target = $region33
    $region32: #{tpu_custom_call.1} parent=1 // pred_region
      %s120 = ssub.s32 128, 128
      %121 = vsyncadd [#allocation9], %s120
      %s123 = sshll.u32 [#allocation10], 4
      %s124 = int_to_ptr.vmem [resolvable:$true] %s123
      %126 = dma.vmem_to_hbm [thread:$0]  %s124, 128, %s4, [#allocation9]
    $region33: #{tpu_custom_call.1} parent=1 // pred_fallthru
      _
    // Predicated region
    $region34: #{tpu_custom_call.1} parent=1 // pred_check
      _
    $region35: #{tpu_custom_call.1} parent=1 // pred_check_branch
      %128 = sbr.rel (0) target = $region37
    $region36: #{tpu_custom_call.1} parent=1 // pred_region
      %129 = dma.done [#allocation4], 128
    $region37: #{tpu_custom_call.1} parent=1 // pred_fallthru
      _
    // Predicated region
    $region38: #{tpu_custom_call.1} parent=1 // pred_check
      _
    $region39: #{tpu_custom_call.1} parent=1 // pred_check_branch
      %131 = sbr.rel (0) target = $region41
    $region40: #{tpu_custom_call.1} parent=1 // pred_region
      %132 = dma.done [#allocation9], 128
    $region41: #{tpu_custom_call.1} parent=1 // pred_fallthru
      _
    // Predicated region
    $region42: #{tpu_custom_call.1} parent=1 // pred_check
      _
    $region43: #{tpu_custom_call.1} parent=1 // pred_check_branch
      %134 = sbr.rel (0) target = $region45
    $region44: #{tpu_custom_call.1} parent=1 // pred_region
      %135 = dma.done [#allocation9], 128
    $region45: #{tpu_custom_call.1} parent=1 // pred_fallthru
      _
    %136 = vsyncpa [#allocation3], 1
    %137 = vsyncpa [#allocation6], 1
    %138 = vsyncpa [#allocation4], 1
    %139 = vsyncpa [#allocation9], 1

</llo_original>
